<compile_context>
chip_gen: v7x
topology: tpu7x:2x2x1
jax: 0.10.0
libtpu: 0.0.40
codegen_flags: <defaults>
</compile_context>

<pallas_src>
import math
import functools

import jax
import jax.numpy as jnp
from jax import lax
from jax.experimental import pallas as pl
from jax.experimental.pallas import tpu as pltpu


# ----------------------------------------------------------------------------- helpers

def _layernorm(x, gamma, beta, eps):
    mu = jnp.mean(x, axis=-1, keepdims=True)
    var = jnp.mean((x - mu) ** 2, axis=-1, keepdims=True)
    return (x - mu) * lax.rsqrt(var + eps) * gamma + beta


def _gelu_exact(x):
    # PyTorch nn.GELU() default: exact erf-based GELU.
    return 0.5 * x * (1.0 + lax.erf(x * (1.0 / math.sqrt(2.0))))


def _pick_q_tile(seq_len):
    for t in (256, 128, 64, 32, 16, 8):
        if seq_len % t == 0:
            return t
    return seq_len


def _vmem_limit_bytes(*, S, H, I, tq, n_heads):
    """Footprint estimate (bytes) with headroom, clamped to a safe range."""
    bf, f32 = 2, 4
    d = H // n_heads
    weights = (4 * H * H + 2 * H * I) * bf              # bf16 weight matrices
    vecs = (8 * H + I) * f32                            # biases + LN params
    io_blocks = (S * H + 2 * tq * H + S) * f32          # x_full, x_tile, out tile, mask
    scratch = (2 * n_heads * S * d + n_heads * tq * d + tq * H) * bf
    live = 2 * n_heads * tq * S * f32 + tq * I * f32 + 4 * tq * H * f32
    est = 2 * (weights + vecs + io_blocks) + scratch + live   # x2: double-buffered pipeline
    return int(min(96 * 2**20, max(32 * 2**20, 2 * est)))


# ----------------------------------------------------------------------------- embedding

def _embedding_ln_kernel(tok_ref, pos_ref, typ_ref, g_ref, b_ref, o_ref, *, eps):
    x = tok_ref[0] + pos_ref[0] + typ_ref[0]             # (S, H) f32
    o_ref[0] = _layernorm(x, g_ref[...], b_ref[...], eps).astype(o_ref.dtype)


def bert_embedding_pallas(tok_e, pos_e, typ_e, gamma, beta, *, eps):
    B, S, H = tok_e.shape
    return pl.pallas_call(
        functools.partial(_embedding_ln_kernel, eps=eps),
        out_shape=jax.ShapeDtypeStruct((B, S, H), jnp.float32),
        grid_spec=pltpu.PrefetchScalarGridSpec(
            num_scalar_prefetch=0,
            grid=(B,),
            in_specs=[
                pl.BlockSpec((1, S, H), lambda b: (b, 0, 0)),
                pl.BlockSpec((1, S, H), lambda b: (0, 0, 0)),   # positions shared over batch
                pl.BlockSpec((1, S, H), lambda b: (b, 0, 0)),
                pl.BlockSpec((1, H), lambda b: (0, 0)),
                pl.BlockSpec((1, H), lambda b: (0, 0)),
            ],
            out_specs=pl.BlockSpec((1, S, H), lambda b: (b, 0, 0)),
        ),
        compiler_params=pltpu.CompilerParams(dimension_semantics=("parallel",)),
    )(tok_e, pos_e, typ_e, gamma, beta)


# ----------------------------------------------------------------------------- encoder layer

def bert_layer_kernel(
    x_tile_ref, x_full_ref, mb_ref,
    wq_ref, bq_ref, wk_ref, bk_ref, wv_ref, bv_ref,
    wo_ref, bo_ref, g1_ref, be1_ref,
    w1_ref, b1_ref, w2_ref, b2_ref, g2_ref, be2_ref,
    o_ref,
    k_scr, v_scr, q_scr, ctx_scr,
    *, n_heads, eps,
):
    qi = pl.program_id(1)
    S = x_full_ref.shape[1]
    H = x_tile_ref.shape[2]
    d = H // n_heads
    scale = 1.0 / math.sqrt(d)

    # ---- K / V for the whole sequence: compute once per batch element -------------------
    @pl.when(qi == 0)
    def _():
        xf = x_full_ref[0].astype(jnp.bfloat16)                                   # (S, H)
        k = jnp.dot(xf, wk_ref[...], preferred_element_type=jnp.float32) + bk_ref[...]
        v = jnp.dot(xf, wv_ref[...], preferred_element_type=jnp.float32) + bv_ref[...]
        kb = k.astype(jnp.bfloat16)
        vb = v.astype(jnp.bfloat16)
        for h in range(n_heads):                                                  # head-major scratch
            k_scr[h] = kb[:, h * d:(h + 1) * d]
            v_scr[h] = vb[:, h * d:(h + 1) * d]

    x32 = x_tile_ref[0]                                                           # (tq, H) f32
    xb = x32.astype(jnp.bfloat16)
    mask_bias = mb_ref[0]                                                         # (1, S) f32

    # ---- Q projection for this query tile ------------------------------------------------
    q = jnp.dot(xb, wq_ref[...], preferred_element_type=jnp.float32) + bq_ref[...]
    qb = q.astype(jnp.bfloat16)
    for h in range(n_heads):
        q_scr[h] = qb[:, h * d:(h + 1) * d]

    # ---- attention, batched over heads ----------------------------------------------------
    s = jnp.einsum("hqd,hkd->hqk", q_scr[...], k_scr[...],
                   preferred_element_type=jnp.float32) * scale                    # (nh, tq, S)
    s = s + mask_bias[None, :, :]
    s = s - jnp.max(s, axis=-1, keepdims=True)
    p = jnp.exp(s)
    p = p * pl.reciprocal(jnp.sum(p, axis=-1, keepdims=True), approx=True)
    ctx = jnp.einsum("hqk,hkd->hqd", p.astype(jnp.bfloat16), v_scr[...],
                     preferred_element_type=jnp.float32)                          # (nh, tq, d)
    for h in range(n_heads):
        ctx_scr[:, h * d:(h + 1) * d] = ctx[h].astype(jnp.bfloat16)

    attn = jnp.dot(ctx_scr[...], wo_ref[...], preferred_element_type=jnp.float32) + bo_ref[...]
    h1 = _layernorm(attn + x32, g1_ref[...], be1_ref[...], eps)                   # f32

    # ---- feed-forward (Intermediate) -------------------------------------------------------
    inter = jnp.dot(h1.astype(jnp.bfloat16), w1_ref[...],
                    preferred_element_type=jnp.float32) + b1_ref[...]
    inter = _gelu_exact(inter)
    ff = jnp.dot(inter.astype(jnp.bfloat16), w2_ref[...],
                 preferred_element_type=jnp.float32) + b2_ref[...]
    out = _layernorm(ff + h1, g2_ref[...], be2_ref[...], eps)

    o_ref[0] = out.astype(o_ref.dtype)


def bert_layer_pallas(x, mask_bias, params, *, n_heads, eps, tq=None):
    B, S, H = x.shape
    I = params["w1"].shape[1]
    assert H % n_heads == 0
    d = H // n_heads
    if tq is None:
        tq = _pick_q_tile(S)
    nq = S // tq

    bf = jnp.bfloat16
    wq = params["wq"].astype(bf); wk = params["wk"].astype(bf)
    wv = params["wv"].astype(bf); wo = params["wo"].astype(bf)
    w1 = params["w1"].astype(bf); w2 = params["w2"].astype(bf)

    def const(shape):
        return pl.BlockSpec(shape, lambda b, q: (0,) * len(shape))

    in_specs = [
        pl.BlockSpec((1, tq, H), lambda b, q: (b, q, 0)),    # x: query-row tile
        pl.BlockSpec((1, S, H), lambda b, q: (b, 0, 0)),     # x: full sequence (K/V rows)
        pl.BlockSpec((1, 1, S), lambda b, q: (b, 0, 0)),     # additive mask bias
        const((H, H)), const((1, H)),                        # Wq, bq
        const((H, H)), const((1, H)),                        # Wk, bk
        const((H, H)), const((1, H)),                        # Wv, bv
        const((H, H)), const((1, H)),                        # Wo, bo
        const((1, H)), const((1, H)),                        # ln1 gamma, beta
        const((H, I)), const((1, I)),                        # W1, b1
        const((I, H)), const((1, H)),                        # W2, b2
        const((1, H)), const((1, H)),                        # ln2 gamma, beta
    ]
    scratch_shapes = [
        pltpu.VMEM((n_heads, S, d), bf),                     # K (head-major)
        pltpu.VMEM((n_heads, S, d), bf),                     # V (head-major)
        pltpu.VMEM((n_heads, tq, d), bf),                    # Q (head-major)
        pltpu.VMEM((tq, H), bf),                             # context slab
    ]

    kernel = functools.partial(bert_layer_kernel, n_heads=n_heads, eps=eps)

    return pl.pallas_call(
        kernel,
        out_shape=jax.ShapeDtypeStruct((B, S, H), x.dtype),
        grid_spec=pltpu.PrefetchScalarGridSpec(
            num_scalar_prefetch=0,
            grid=(B, nq),
            in_specs=in_specs,
            out_specs=pl.BlockSpec((1, tq, H), lambda b, q: (b, q, 0)),
            scratch_shapes=scratch_shapes,
        ),
        compiler_params=pltpu.CompilerParams(
            dimension_semantics=("parallel", "arbitrary"),
            vmem_limit_bytes=_vmem_limit_bytes(S=S, H=H, I=I, tq=tq, n_heads=n_heads),
        ),
    )(
        x, x, mask_bias,
        wq, params["bq"], wk, params["bk"], wv, params["bv"], wo, params["bo"],
        params["ln1_g"], params["ln1_b"],
        w1, params["b1"], w2, params["b2"],
        params["ln2_g"], params["ln2_b"],
    )


# ----------------------------------------------------------------------------- pooler

def _pooler_kernel(x_ref, w_ref, b_ref, o_ref):
    xb = x_ref[...].astype(jnp.bfloat16)
    y = jnp.dot(xb, w_ref[...], preferred_element_type=jnp.float32) + b_ref[...]
    o_ref[...] = jnp.tanh(y).astype(o_ref.dtype)


def bert_pooler_pallas(first_tok, w, b):
    B, H = first_tok.shape
    return pl.pallas_call(
        _pooler_kernel,
        out_shape=jax.ShapeDtypeStruct((B, H), jnp.float32),
        grid_spec=pltpu.PrefetchScalarGridSpec(
            num_scalar_prefetch=0,
            grid=(1,),
            in_specs=[
                pl.BlockSpec((B, H), lambda i: (0, 0)),
                pl.BlockSpec((H, H), lambda i: (0, 0)),
                pl.BlockSpec((1, H), lambda i: (0, 0)),
            ],
            out_specs=pl.BlockSpec((B, H), lambda i: (0, 0)),
        ),
    )(first_tok, w.astype(jnp.bfloat16), b)


# ----------------------------------------------------------------------------- full model

def bert_model(inputs, mask, params, *, n_heads, eps):
    """inputs: (B, S) int token ids; mask: (B, S) int (1 = keep, 0 = masked)."""
    B, S = inputs.shape
    emb = params["embeddings"]

    # TODO(synk): embedding gathers (nn.Embedding lookups) stay in XLA (jnp.take); a Pallas
    #             DMA-gather adds no value at these table sizes.
    tok_e = jnp.take(emb["token"], inputs, axis=0)                      # (B, S, H)
    pos_ids = jnp.arange(S, dtype=jnp.int32)[None, :]                   # (1, S)
    pos_e = jnp.take(emb["position"], pos_ids, axis=0)                  # (1, S, H)
    typ_ids = jnp.zeros((B, S), jnp.int32)                              # default token_type_ids
    typ_e = jnp.take(emb["token_type"], typ_ids, axis=0)                # (B, S, H)

    h = bert_embedding_pallas(tok_e, pos_e, typ_e, emb["ln_g"], emb["ln_b"], eps=eps)

    if mask is None:
        mask = jnp.ones((B, S), jnp.int32)
    mask_bias = ((1.0 - mask.astype(jnp.float32)) * -10000.0).reshape(B, 1, S)

    for lp in params["layers"]:
        h = bert_layer_pallas(h, mask_bias, lp, n_heads=n_heads, eps=eps)

    pooled = bert_pooler_pallas(h[:, 0, :], params["pooler_w"], params["pooler_b"])
    return pooled, h


# ----------------------------------------------------------------------------- params

def _init_layer_params(key, hidden_dim, intermediate_size):
    ks = jax.random.split(key, 6)
    std = 0.02
    H, I = hidden_dim, intermediate_size
    return {
        "wq": std * jax.random.normal(ks[0], (H, H), jnp.float32),
        "wk": std * jax.random.normal(ks[1], (H, H), jnp.float32),
        "wv": std * jax.random.normal(ks[2], (H, H), jnp.float32),
        "wo": std * jax.random.normal(ks[3], (H, H), jnp.float32),
        "w1": std * jax.random.normal(ks[4], (H, I), jnp.float32),
        "w2": std * jax.random.normal(ks[5], (I, H), jnp.float32),
        "bq": jnp.zeros((1, H), jnp.float32), "bk": jnp.zeros((1, H), jnp.float32),
        "bv": jnp.zeros((1, H), jnp.float32), "bo": jnp.zeros((1, H), jnp.float32),
        "b1": jnp.zeros((1, I), jnp.float32), "b2": jnp.zeros((1, H), jnp.float32),
        "ln1_g": jnp.ones((1, H), jnp.float32), "ln1_b": jnp.zeros((1, H), jnp.float32),
        "ln2_g": jnp.ones((1, H), jnp.float32), "ln2_b": jnp.zeros((1, H), jnp.float32),
    }


def init_bert_params(key, *, n_tokens, hidden_dim, max_seq_len, n_token_types,
                     pad_token_id, intermediate_size, n_hidden_layers):
    ks = jax.random.split(key, 4 + n_hidden_layers)
    std = 0.02
    H = hidden_dim
    token_tab = std * jax.random.normal(ks[0], (n_tokens, H), jnp.float32)
    token_tab = token_tab.at[pad_token_id].set(0.0)          # nn.Embedding padding_idx row
    params = {
        "embeddings": {
            "token": token_tab,
            "position": std * jax.random.normal(ks[1], (max_seq_len, H), jnp.float32),
            "token_type": std * jax.random.normal(ks[2], (n_token_types, H), jnp.float32),
            "ln_g": jnp.ones((1, H), jnp.float32),
            "ln_b": jnp.zeros((1, H), jnp.float32),
        },
        "layers": [_init_layer_params(k, H, intermediate_size) for k in ks[4:]],
        "pooler_w": std * jax.random.normal(ks[3], (H, H), jnp.float32),
        "pooler_b": jnp.zeros((1, H), jnp.float32),
    }
    return params


# ----------------------------------------------------------------------------- demo

if __name__ == "__main__":
    n_tokens = 64
    token_dim = hidden_dim = 32
    max_seq_len = 16
    n_token_types = 2
    pad_token_id = 0
    n_heads = 4
    intermediate_size = 64
    n_hidden_layers = 2
    layer_norm_eps = 1e-12
    batch, seq_len = 2, 8
    # attn_dropout / hidden_dropout: identity at inference (not applied)

    key = jax.random.PRNGKey(0)
    k_tok, k_params = jax.random.split(key)
    inputs = jax.random.randint(k_tok, (batch, seq_len), 1, n_tokens, dtype=jnp.int32)
    inputs = inputs.at[1, 6:].set(pad_token_id)              # pad tail of sample 1
    mask = (inputs != pad_token_id).astype(jnp.int32)

    params = init_bert_params(
        k_params, n_tokens=n_tokens, hidden_dim=hidden_dim, max_seq_len=max_seq_len,
        n_token_types=n_token_types, pad_token_id=pad_token_id,
        intermediate_size=intermediate_size, n_hidden_layers=n_hidden_layers)

    pooled, encoded = bert_model(inputs, mask, params, n_heads=n_heads, eps=layer_norm_eps)
    pooled = jax.block_until_ready(pooled)
    encoded = jax.block_until_ready(encoded)

    assert pooled.shape == (batch, hidden_dim)
    assert encoded.shape == (batch, seq_len, hidden_dim)
    assert bool(jnp.all(jnp.isfinite(pooled)))
    assert bool(jnp.all(jnp.isfinite(encoded)))
    print("KERNEL_OK")
</pallas_src>

<mosaic_0001>
module attributes {stable_mosaic.version = 11 : i64} {
  func.func @_embedding_ln_kernel(%arg0: i32, %arg1: memref<1x8x32xf32, #tpu.memory_space<vmem>>, %arg2: memref<1x8x32xf32, #tpu.memory_space<vmem>>, %arg3: memref<1x8x32xf32, #tpu.memory_space<vmem>>, %arg4: memref<1x32xf32, #tpu.memory_space<vmem>>, %arg5: memref<1x32xf32, #tpu.memory_space<vmem>>, %arg6: memref<1x8x32xf32, #tpu.memory_space<vmem>>) attributes {dimension_semantics = [#tpu.dimension_semantics<parallel>], iteration_bounds = array<i64: 2>, scalar_prefetch = 0 : i64, scratch_operands = 0 : i64, tpu.core_type = #tpu.core_type<tc>, window_params = [{transform_indices = @transform_0, window_bounds = array<i64: 1, 8, 32>}, {pipeline_mode = #tpu.pipeline_mode<synchronous>, transform_indices = @transform_1, window_bounds = array<i64: 1, 8, 32>}, {transform_indices = @transform_2, window_bounds = array<i64: 1, 8, 32>}, {pipeline_mode = #tpu.pipeline_mode<synchronous>, transform_indices = @transform_3, window_bounds = array<i64: 1, 32>}, {pipeline_mode = #tpu.pipeline_mode<synchronous>, transform_indices = @transform_4, window_bounds = array<i64: 1, 32>}, {transform_indices = @transform_5, window_bounds = array<i64: 1, 8, 32>}]} {
    %c0 = arith.constant 0 : index
    %c0_0 = arith.constant 0 : index
    %c0_1 = arith.constant 0 : index
    %0 = vector.load %arg1[%c0, %c0_0, %c0_1] : memref<1x8x32xf32, #tpu.memory_space<vmem>>, vector<1x8x32xf32>
    %1 = vector.shape_cast %0 : vector<1x8x32xf32> to vector<8x32xf32>
    %c0_2 = arith.constant 0 : index
    %c0_3 = arith.constant 0 : index
    %c0_4 = arith.constant 0 : index
    %2 = vector.load %arg2[%c0_2, %c0_3, %c0_4] : memref<1x8x32xf32, #tpu.memory_space<vmem>>, vector<1x8x32xf32>
    %3 = vector.shape_cast %2 : vector<1x8x32xf32> to vector<8x32xf32>
    %4 = arith.addf %1, %3 : vector<8x32xf32>
    %c0_5 = arith.constant 0 : index
    %c0_6 = arith.constant 0 : index
    %c0_7 = arith.constant 0 : index
    %5 = vector.load %arg3[%c0_5, %c0_6, %c0_7] : memref<1x8x32xf32, #tpu.memory_space<vmem>>, vector<1x8x32xf32>
    %6 = vector.shape_cast %5 : vector<1x8x32xf32> to vector<8x32xf32>
    %7 = arith.addf %4, %6 : vector<8x32xf32>
    %c0_8 = arith.constant 0 : index
    %c0_9 = arith.constant 0 : index
    %8 = vector.load %arg4[%c0_8, %c0_9] : memref<1x32xf32, #tpu.memory_space<vmem>>, vector<1x32xf32>
    %c0_10 = arith.constant 0 : index
    %c0_11 = arith.constant 0 : index
    %9 = vector.load %arg5[%c0_10, %c0_11] : memref<1x32xf32, #tpu.memory_space<vmem>>, vector<1x32xf32>
    %cst = arith.constant dense<0.000000e+00> : vector<8xf32>
    %10 = vector.multi_reduction <add>, %7, %cst [1] : vector<8x32xf32> to vector<8xf32>
    %11 = vector.shape_cast %10 : vector<8xf32> to vector<8x1xf32>
    %cst_12 = arith.constant 3.200000e+01 : f32
    %12 = vector.broadcast %cst_12 : f32 to vector<8x1xf32>
    %13 = arith.divf %11, %12 : vector<8x1xf32>
    %14 = vector.broadcast %13 : vector<8x1xf32> to vector<8x32xf32>
    %15 = arith.subf %7, %14 : vector<8x32xf32>
    %16 = arith.mulf %15, %15 : vector<8x32xf32>
    %cst_13 = arith.constant dense<0.000000e+00> : vector<8xf32>
    %17 = vector.multi_reduction <add>, %16, %cst_13 [1] : vector<8x32xf32> to vector<8xf32>
    %18 = vector.shape_cast %17 : vector<8xf32> to vector<8x1xf32>
    %cst_14 = arith.constant 3.200000e+01 : f32
    %19 = vector.broadcast %cst_14 : f32 to vector<8x1xf32>
    %20 = arith.divf %18, %19 : vector<8x1xf32>
    %21 = vector.broadcast %13 : vector<8x1xf32> to vector<8x32xf32>
    %22 = arith.subf %7, %21 : vector<8x32xf32>
    %cst_15 = arith.constant 9.99999996E-13 : f32
    %23 = vector.broadcast %cst_15 : f32 to vector<8x1xf32>
    %24 = arith.addf %20, %23 : vector<8x1xf32>
    %25 = math.rsqrt %24 : vector<8x1xf32>
    %26 = vector.broadcast %25 : vector<8x1xf32> to vector<8x32xf32>
    %27 = arith.mulf %22, %26 : vector<8x32xf32>
    %28 = vector.broadcast %8 : vector<1x32xf32> to vector<8x32xf32>
    %29 = arith.mulf %27, %28 : vector<8x32xf32>
    %30 = vector.broadcast %9 : vector<1x32xf32> to vector<8x32xf32>
    %31 = arith.addf %29, %30 : vector<8x32xf32>
    %c0_16 = arith.constant 0 : index
    %c0_17 = arith.constant 0 : index
    %c0_18 = arith.constant 0 : index
    %32 = vector.load %arg6[%c0_16, %c0_17, %c0_18] : memref<1x8x32xf32, #tpu.memory_space<vmem>>, vector<1x8x32xf32>
    %33 = vector.shape_cast %32 : vector<1x8x32xf32> to vector<8x32xf32>
    %34 = vector.shape_cast %31 : vector<8x32xf32> to vector<1x8x32xf32>
    tpu.vector_store %arg6[%c0_16, %c0_17, %c0_18], %34 {strides = array<i32>} : memref<1x8x32xf32, #tpu.memory_space<vmem>>, vector<1x8x32xf32>,
    return
  }
  func.func @transform_0(%arg0: i32) -> (i32, i32, i32) {
    %c0_i32 = arith.constant 0 : i32
    %c0_i32_0 = arith.constant 0 : i32
    %c0_i32_1 = arith.constant 0 : i32
    return %arg0, %c0_i32, %c0_i32_0 : i32, i32, i32
  }
  func.func @transform_1(%arg0: i32) -> (i32, i32, i32) {
    %c0_i32 = arith.constant 0 : i32
    %c0_i32_0 = arith.constant 0 : i32
    %c0_i32_1 = arith.constant 0 : i32
    %c0_i32_2 = arith.constant 0 : i32
    return %c0_i32, %c0_i32_0, %c0_i32_1 : i32, i32, i32
  }
  func.func @transform_2(%arg0: i32) -> (i32, i32, i32) {
    %c0_i32 = arith.constant 0 : i32
    %c0_i32_0 = arith.constant 0 : i32
    %c0_i32_1 = arith.constant 0 : i32
    return %arg0, %c0_i32, %c0_i32_0 : i32, i32, i32
  }
  func.func @transform_3(%arg0: i32) -> (i32, i32) {
    %c0_i32 = arith.constant 0 : i32
    %c0_i32_0 = arith.constant 0 : i32
    %c0_i32_1 = arith.constant 0 : i32
    return %c0_i32, %c0_i32_0 : i32, i32
  }
  func.func @transform_4(%arg0: i32) -> (i32, i32) {
    %c0_i32 = arith.constant 0 : i32
    %c0_i32_0 = arith.constant 0 : i32
    %c0_i32_1 = arith.constant 0 : i32
    return %c0_i32, %c0_i32_0 : i32, i32
  }
  func.func @transform_5(%arg0: i32) -> (i32, i32, i32) {
    %c0_i32 = arith.constant 0 : i32
    %c0_i32_0 = arith.constant 0 : i32
    %c0_i32_1 = arith.constant 0 : i32
    return %arg0, %c0_i32, %c0_i32_0 : i32, i32, i32
  }
}

</mosaic_0001>

<llo_original>
// kernel: tpu_custom_call.1
$region0: #{tpu_custom_call.1}
  #allocation0 [shape = 'u32[]', space=smem, size = 0x4, offset = 0x4, fixed_abs, tag = 'smem constant byte address 0x4 - core index']
  #allocation1 [shape = 'u32[144,128]{1,0:T(1,128)}', space=vmem, size = 0x12000, scoped, tag = 'internal scratch']
  %s0 = inlined_call_operand.hbm [shape: f32[2,8,32], index: 0, kind: input, shape index: {}]
  %s1 = inlined_call_operand.hbm [shape: f32[1,8,32], index: 1, kind: input, shape index: {}]
  %s2 = inlined_call_operand.hbm [shape: f32[2,8,32], index: 2, kind: input, shape index: {}]
  %s3 = inlined_call_operand.vmem [shape: f32[1,32], index: 3, kind: input, shape index: {}]
  %s4 = inlined_call_operand.vmem [shape: f32[1,32], index: 4, kind: input, shape index: {}]
  %s5 = inlined_call_operand.hbm [shape: f32[2,8,32], index: 5, kind: output, shape index: {}]
  %s6 = sld [smem:[#allocation0]]
  $region65: #{tpu_custom_call.1} parent=0
    _
  %s8 = ssub.s32 1, %s6
  %s9 = scalar_select 0, %s8, %s6
  $region1: #{tpu_custom_call.1} parent=0
    #allocation2 [shape = 'u8[8192]{0}', space=vmem, size = 0x2000, scoped, tag = 'input window, operand 0']
    #allocation3 [shape = 's32[2]{0}', space=sflag, size = 0x8, scoped, tag = 'scoped memory for tpu_custom_call.1']
    #allocation4 [shape = 's32[2]{0}', space=sflag, size = 0x8, scoped, tag = 'scoped memory for tpu_custom_call.1']
    #allocation5 [shape = 'u8[4096]{0}', space=vmem, size = 0x1000, scoped, tag = 'input window, operand 1, single buffered']
    #allocation6 [shape = 's32[1]{0}', space=sflag, size = 0x4, scoped, tag = 'scoped memory for tpu_custom_call.1']
    #allocation7 [shape = 'u8[8192]{0}', space=vmem, size = 0x2000, scoped, tag = 'input window, operand 2']
    #allocation8 [shape = 'u8[8192]{0}', space=vmem, size = 0x2000, scoped, tag = 'output window, operand 0']
    %10 = vsyncpa [#allocation3], 0
    %s11 = scalar_lea.sflag [#allocation3], 1
    %12 = vsyncpa %s11, 0
    %13 = vsyncpa [#allocation6], 0
    %14 = vsyncpa [#allocation4], 0
    %s15 = scalar_lea.sflag [#allocation4], 1
    %16 = vsyncpa %s15, 0
    loop: start=0, step=1, limit=4
    $region2: #{tpu_custom_call.1} parent=1 // loop_pre_header
      _
    $region3: #{tpu_custom_call.1} parent=1 // loop_header
      %s18 = sphi 0, %s22
      %p19 = scmp.ge.s32.totalorder %s18, 4
      %s28 = sphi 0, %s30
      %s31 = sphi 0, %s28
      %s32 = sphi 0, %s31
      %s48 = sphi 0, %s32
      %s52 = sphi 0, %s52
      %s54 = sphi 0, %s52
      %s55 = sphi 0, %s54
      %s69 = sphi 0, %s55
      %s75 = sphi 0, %s77
      %s78 = sphi 0, %s75
      %s79 = sphi 0, %s78
      %s95 = sphi 0, %s79
      %s99 = sphi 0, %s99
      %s101 = sphi 0, %s99
      %s102 = sphi 0, %s101
      %s116 = sphi 0, %s102
      %s120 = sphi 0, %s120
      %s122 = sphi 0, %s120
      %s123 = sphi 0, %s122
      %s137 = sphi 0, %s123
      %s143 = sphi 0, %s145
      %s146 = sphi 0, %s143
      %s147 = sphi 0, %s146
      %s163 = sphi 0, %s147
    $region4: #{tpu_custom_call.1} parent=1 // loop_header_branch
      %21 = sbr.rel (%p19) target = $region8
    $region5: #{tpu_custom_call.1} parent=1 // loop_body
      %s23 = ssub.s32 %s18, 1
      %s24 = ssub.s32 %s18, 2
      %s25 = sadd.s32 %s18, 1
      %s26 = ssub.s32 %s18, %s25
      %p27 = scmp.eq.s32.totalorder %s26, 0
      %s29 = sadd.s32 %s28, 1
      %s30 = scalar_select %p27, %s28, %s29
      %p33 = pneg %p27
      %p34 = scmp.eq.s32.totalorder %s18, 1
      %p35 = por %p33, %p34
      %p36 = scmp.ne.s32.totalorder %s28, %s31
      %p37 = scmp.eq.s32.totalorder %s18, 0
      %p38 = por %p36, %p37
      %p39 = scmp.ne.s32.totalorder %s28, %s31
      %p40 = scmp.eq.s32.totalorder %s23, 1
      %p41 = por %p39, %p40
      %p42 = scmp.ne.s32.totalorder %s31, %s32
      %p43 = scmp.eq.s32.totalorder %s23, 0
      %p44 = por %p42, %p43
      %p45 = scmp.ne.s32.totalorder %s31, %s32
      %p46 = scmp.eq.s32.totalorder %s24, 1
      %p47 = por %p45, %p46
      %p49 = scmp.ne.s32.totalorder %s32, %s48
      %p50 = scmp.eq.s32.totalorder %s24, 0
      %p51 = por %p49, %p50
      %s53 = sadd.s32 %s52, 1
      %p56 = scmp.eq.s32.totalorder %s18, 1
      %p57 = scmp.ne.s32.totalorder %s52, %s54
      %p58 = scmp.eq.s32.totalorder %s18, 0
      %p59 = por %p57, %p58
      %p60 = scmp.ne.s32.totalorder %s52, %s54
      %p61 = scmp.eq.s32.totalorder %s23, 1
      %p62 = por %p60, %p61
      %p63 = scmp.ne.s32.totalorder %s54, %s55
      %p64 = scmp.eq.s32.totalorder %s23, 0
      %p65 = por %p63, %p64
      %p66 = scmp.ne.s32.totalorder %s54, %s55
      %p67 = scmp.eq.s32.totalorder %s24, 1
      %p68 = por %p66, %p67
      %p70 = scmp.ne.s32.totalorder %s55, %s69
      %p71 = scmp.eq.s32.totalorder %s24, 0
      %p72 = por %p70, %p71
      %s73 = ssub.s32 %s18, %s25
      %p74 = scmp.eq.s32.totalorder %s73, 0
      %s76 = sadd.s32 %s75, 1
      %s77 = scalar_select %p74, %s75, %s76
      %p80 = pneg %p74
      %p81 = scmp.eq.s32.totalorder %s18, 1
      %p82 = por %p80, %p81
      %p83 = scmp.ne.s32.totalorder %s75, %s78
      %p84 = scmp.eq.s32.totalorder %s18, 0
      %p85 = por %p83, %p84
      %p86 = scmp.ne.s32.totalorder %s75, %s78
      %p87 = scmp.eq.s32.totalorder %s23, 1
      %p88 = por %p86, %p87
      %p89 = scmp.ne.s32.totalorder %s78, %s79
      %p90 = scmp.eq.s32.totalorder %s23, 0
      %p91 = por %p89, %p90
      %p92 = scmp.ne.s32.totalorder %s78, %s79
      %p93 = scmp.eq.s32.totalorder %s24, 1
      %p94 = por %p92, %p93
      %p96 = scmp.ne.s32.totalorder %s79, %s95
      %p97 = scmp.eq.s32.totalorder %s24, 0
      %p98 = por %p96, %p97
      %s100 = sadd.s32 %s99, 1
      %p103 = scmp.eq.s32.totalorder %s18, 1
      %p104 = scmp.ne.s32.totalorder %s99, %s101
      %p105 = scmp.eq.s32.totalorder %s18, 0
      %p106 = por %p104, %p105
      %p107 = scmp.ne.s32.totalorder %s99, %s101
      %p108 = scmp.eq.s32.totalorder %s23, 1
      %p109 = por %p107, %p108
      %p110 = scmp.ne.s32.totalorder %s101, %s102
      %p111 = scmp.eq.s32.totalorder %s23, 0
      %p112 = por %p110, %p111
      %p113 = scmp.ne.s32.totalorder %s101, %s102
      %p114 = scmp.eq.s32.totalorder %s24, 1
      %p115 = por %p113, %p114
      %p117 = scmp.ne.s32.totalorder %s102, %s116
      %p118 = scmp.eq.s32.totalorder %s24, 0
      %p119 = por %p117, %p118
      %s121 = sadd.s32 %s120, 1
      %p124 = scmp.eq.s32.totalorder %s18, 1
      %p125 = scmp.ne.s32.totalorder %s120, %s122
      %p126 = scmp.eq.s32.totalorder %s18, 0
      %p127 = por %p125, %p126
      %p128 = scmp.ne.s32.totalorder %s120, %s122
      %p129 = scmp.eq.s32.totalorder %s23, 1
      %p130 = por %p128, %p129
      %p131 = scmp.ne.s32.totalorder %s122, %s123
      %p132 = scmp.eq.s32.totalorder %s23, 0
      %p133 = por %p131, %p132
      %p134 = scmp.ne.s32.totalorder %s122, %s123
      %p135 = scmp.eq.s32.totalorder %s24, 1
      %p136 = por %p134, %p135
      %p138 = scmp.ne.s32.totalorder %s123, %s137
      %p139 = scmp.eq.s32.totalorder %s24, 0
      %p140 = por %p138, %p139
      %s141 = ssub.s32 %s18, %s25
      %p142 = scmp.eq.s32.totalorder %s141, 0
      %s144 = sadd.s32 %s143, 1
      %s145 = scalar_select %p142, %s143, %s144
      %p148 = pneg %p142
      %p149 = scmp.eq.s32.totalorder %s18, 1
      %p150 = por %p148, %p149
      %p151 = scmp.ne.s32.totalorder %s143, %s146
      %p152 = scmp.eq.s32.totalorder %s18, 0
      %p153 = por %p151, %p152
      %p154 = scmp.ne.s32.totalorder %s143, %s146
      %p155 = scmp.eq.s32.totalorder %s23, 1
      %p156 = por %p154, %p155
      %p157 = scmp.ne.s32.totalorder %s146, %s147
      %p158 = scmp.eq.s32.totalorder %s23, 0
      %p159 = por %p157, %p158
      %p160 = scmp.ne.s32.totalorder %s146, %s147
      %p161 = scmp.eq.s32.totalorder %s24, 1
      %p162 = por %p160, %p161
      %p164 = scmp.ne.s32.totalorder %s147, %s163
      %p165 = scmp.eq.s32.totalorder %s24, 0
      %p166 = por %p164, %p165
      %p167 = scmp.le.s32.totalorder 1, %s18
      %p168 = scmp.lt.s32.totalorder %s18, 3
      %p169 = pnand %p167, %p168
      %p170 = pneg %p169
      // Predicated region
      $region9: #{tpu_custom_call.1} parent=5 // pred_check
        _
      $region10: #{tpu_custom_call.1} parent=5 // pred_check_branch
        %172 = sbr.rel (%p169) target = $region12
      $region11: #{tpu_custom_call.1} parent=5 // pred_region
        %s173 = ssub.s32 %s18, 1
        // Predicated region
        $region13: #{tpu_custom_call.1} parent=11 // pred_check
          %p174 = pneg %p65
        $region14: #{tpu_custom_call.1} parent=11 // pred_check_branch
          %176 = sbr.rel (%p174) target = $region16
        $region15: #{tpu_custom_call.1} parent=11 // pred_region
          %s178 = ssub.s32 128, 128
          %179 = vsyncadd [#allocation6], %s178
          %s181 = sshll.u32 [#allocation5], 4
          %s182 = int_to_ptr.vmem [resolvable:$true] %s181
          %184 = dma.hbm_to_vmem [thread:$0]  %s1, 128, %s182, [#allocation6]
        $region16: #{tpu_custom_call.1} parent=11 // pred_fallthru
          _
        // Predicated region
        $region17: #{tpu_custom_call.1} parent=11 // pred_check
          %p185 = pneg %p112
        $region18: #{tpu_custom_call.1} parent=11 // pred_check_branch
          %187 = sbr.rel (%p185) target = $region20
        $region19: #{tpu_custom_call.1} parent=11 // pred_region
          _
        $region20: #{tpu_custom_call.1} parent=11 // pred_fallthru
          _
        // Predicated region
        $region21: #{tpu_custom_call.1} parent=11 // pred_check
          %p188 = pneg %p133
        $region22: #{tpu_custom_call.1} parent=11 // pred_check_branch
          %190 = sbr.rel (%p188) target = $region24
        $region23: #{tpu_custom_call.1} parent=11 // pred_region
          _
        $region24: #{tpu_custom_call.1} parent=11 // pred_fallthru
          _
      $region12: #{tpu_custom_call.1} parent=5 // pred_fallthru
        _
      %p191 = scmp.lt.s32.totalorder %s18, 2
      // Predicated region
      $region25: #{tpu_custom_call.1} parent=5 // pred_check
        %p192 = pneg %p191
      $region26: #{tpu_custom_call.1} parent=5 // pred_check_branch
        %194 = sbr.rel (%p192) target = $region28
      $region27: #{tpu_custom_call.1} parent=5 // pred_region
        // Predicated region
        $region29: #{tpu_custom_call.1} parent=27 // pred_check
          %p195 = pneg %p38
        $region30: #{tpu_custom_call.1} parent=27 // pred_check_branch
          %197 = sbr.rel (%p195) target = $region32
        $region31: #{tpu_custom_call.1} parent=27 // pred_region
          %s198 = sand.u32 %s18, 1
          %s199 = scalar_lea.sflag [#allocation3], %s198
          %s200 = sand.u32 %s28, 1
          %s201 = smul.addr %s200, 8
          %s202 = scalar_lea.vmem [#allocation2], %s201
          %s204 = ssub.s32 128, 128
          %205 = vsyncadd %s199, %s204
          %s206 = smul.addr %s18, 128
          %s207 = scalar_lea.hbm %s0, %s206
          %s209 = sshll.u32 %s202, 4
          %s210 = int_to_ptr.vmem [resolvable:$true] %s209
          %212 = dma.hbm_to_vmem [thread:$0]  %s207, 128, %s210, %s199
        $region32: #{tpu_custom_call.1} parent=27 // pred_fallthru
          _
        // Predicated region
        $region33: #{tpu_custom_call.1} parent=27 // pred_check
          %p213 = pneg %p85
        $region34: #{tpu_custom_call.1} parent=27 // pred_check_branch
          %215 = sbr.rel (%p213) target = $region36
        $region35: #{tpu_custom_call.1} parent=27 // pred_region
          %s216 = sand.u32 %s18, 1
          %s217 = scalar_lea.sflag [#allocation3], %s216
          %s218 = sand.u32 %s75, 1
          %s219 = smul.addr %s218, 8
          %s220 = scalar_lea.vmem [#allocation7], %s219
          %s222 = ssub.s32 128, 128
          %223 = vsyncadd %s217, %s222
          %s224 = smul.addr %s18, 128
          %s225 = scalar_lea.hbm %s2, %s224
          %s227 = sshll.u32 %s220, 4
          %s228 = int_to_ptr.vmem [resolvable:$true] %s227
          %230 = dma.hbm_to_vmem [thread:$0]  %s225, 128, %s228, %s217
        $region36: #{tpu_custom_call.1} parent=27 // pred_fallthru
          _
      $region28: #{tpu_custom_call.1} parent=5 // pred_fallthru
        _
      %p231 = scmp.le.s32.totalorder 1, %s18
      %p232 = scmp.lt.s32.totalorder %s18, 3
      %p233 = pnand %p231, %p232
      %p234 = pneg %p233
      // Predicated region
      $region37: #{tpu_custom_call.1} parent=5 // pred_check
        _
      $region38: #{tpu_custom_call.1} parent=5 // pred_check_branch
        %236 = sbr.rel (%p233) target = $region40
      $region39: #{tpu_custom_call.1} parent=5 // pred_region
        %s237 = ssub.s32 %s18, 1
        %s238 = sand.u32 %s23, 1
        %s239 = scalar_lea.sflag [#allocation3], %s238
        %s240 = sand.u32 %s31, 1
        %s241 = smul.addr %s240, 8
        %s242 = scalar_lea.vmem [#allocation2], %s241
        // Predicated region
        $region41: #{tpu_custom_call.1} parent=39 // pred_check
          %p243 = pneg %p44
        $region42: #{tpu_custom_call.1} parent=39 // pred_check_branch
          %245 = sbr.rel (%p243) target = $region44
        $region43: #{tpu_custom_call.1} parent=39 // pred_region
          %246 = dma.done %s239, 128
        $region44: #{tpu_custom_call.1} parent=39 // pred_fallthru
          _
        // Predicated region
        $region45: #{tpu_custom_call.1} parent=39 // pred_check
          %p247 = pneg %p65
        $region46: #{tpu_custom_call.1} parent=39 // pred_check_branch
          %249 = sbr.rel (%p247) target = $region48
        $region47: #{tpu_custom_call.1} parent=39 // pred_region
          %250 = dma.done [#allocation6], 128
        $region48: #{tpu_custom_call.1} parent=39 // pred_fallthru
          _
        %s251 = sand.u32 %s23, 1
        %s252 = scalar_lea.sflag [#allocation3], %s251
        %s253 = sand.u32 %s78, 1
        %s254 = smul.addr %s253, 8
        %s255 = scalar_lea.vmem [#allocation7], %s254
        // Predicated region
        $region49: #{tpu_custom_call.1} parent=39 // pred_check
          %p256 = pneg %p91
        $region50: #{tpu_custom_call.1} parent=39 // pred_check_branch
          %258 = sbr.rel (%p256) target = $region52
        $region51: #{tpu_custom_call.1} parent=39 // pred_region
          %259 = dma.done %s252, 128
        $region52: #{tpu_custom_call.1} parent=39 // pred_fallthru
          _
        %s260 = sand.u32 %s23, 1
        %s261 = scalar_lea.sflag [#allocation3], %s260
        %s262 = sand.u32 %s31, 1
        %s263 = smul.addr %s262, 8
        %s264 = scalar_lea.vmem [#allocation2], %s263
        %p265 = pneg %p44
        %p266 = pneg %p41
        %p267 = pneg %p65
        %p268 = pneg %p62
        %s269 = sand.u32 %s23, 1
        %s270 = scalar_lea.sflag [#allocation3], %s269
        %s271 = sand.u32 %s78, 1
        %s272 = smul.addr %s271, 8
        %s273 = scalar_lea.vmem [#allocation7], %s272
        %p274 = pneg %p91
        %p275 = pneg %p88
        %p276 = pneg %p112
        %p277 = pneg %p109
        %p278 = pneg %p133
        %p279 = pneg %p130
        %p280 = pneg %p159
        %p281 = pneg %p156
        %s282 = sand.u32 %s146, 1
        %s283 = scalar_lea.sflag [#allocation4], %s282
        %s284 = sand.u32 %s146, 1
        %s285 = smul.addr %s284, 8
        %s286 = scalar_lea.vmem [#allocation8], %s285
        %v287 = vld [vmem:[%s242] sm:$0xff]
        %v288 = vld [vmem:[#allocation5] sm:$0xff]
        %v289 = vadd.f32 %v287, %v288
        %v290 = vld [vmem:[%s255] sm:$0xff]
        %v291 = vadd.f32 %v289, %v290
        %v292 = vld [vmem:[%s3] sm:$0x1]
        %v293 = vld [vmem:[%s4] sm:$0x1]
        %vm294 = vcmask 261120
        %v295 = vsel %vm294, %v291, 0.0
        %296 = vadd.xlane.f32.xlu0 %v295
        %v297 = vpop.xlane.xlu0 %296
        %v298 = vrcp.pop 32.0
        %v299 = vmul.f32 %v297, %v298
        %v300 = vsub.f32 %v291, %v299
        %v301 = vmul.f32 %v300, %v300
        %v302 = vsel %vm294, %v301, 0.0
        %303 = vadd.xlane.f32.xlu0 %v302
        %v304 = vpop.xlane.xlu0 %303
        %v305 = vmul.f32 %v304, %v298
        %v306 = vadd.f32 %v305, 1e-12
        %v307 = vrsqrt.pop %v306
        %v308 = vmul.f32 %v300, %v307
        %v310 = vlaneseq
        %v311 = vshrl.u32 %v310, 7
        %v312 = vsub.s32 0, %v311
        %v313 = vrot.slane %v292, %v312
        %v315 = vmul.f32 %v308, %v313
        %v317 = vlaneseq
        %v318 = vshrl.u32 %v317, 7
        %v319 = vsub.s32 0, %v318
        %v320 = vrot.slane %v293, %v319
        %v322 = vadd.f32 %v315, %v320
        %323 = vst.msk [vmem:[%s286] sm:$0xff] %vm294, %v322
        %s324 = sand.u32 %s146, 1
        %s325 = scalar_lea.sflag [#allocation4], %s324
        %s326 = sand.u32 %s146, 1
        %s327 = smul.addr %s326, 8
        %s328 = scalar_lea.vmem [#allocation8], %s327
        // Predicated region
        $region53: #{tpu_custom_call.1} parent=39 // pred_check
          %p329 = pneg %p156
        $region54: #{tpu_custom_call.1} parent=39 // pred_check_branch
          %331 = sbr.rel (%p329) target = $region56
        $region55: #{tpu_custom_call.1} parent=39 // pred_region
          %s333 = ssub.s32 128, 128
          %334 = vsyncadd %s325, %s333
          %s335 = smul.addr %s23, 128
          %s336 = scalar_lea.hbm %s5, %s335
          %s338 = sshll.u32 %s328, 4
          %s339 = int_to_ptr.vmem [resolvable:$true] %s338
          %341 = dma.vmem_to_hbm [thread:$0]  %s339, 128, %s336, %s325
        $region56: #{tpu_custom_call.1} parent=39 // pred_fallthru
          _
      $region40: #{tpu_custom_call.1} parent=5 // pred_fallthru
        _
      %p342 = scmp.le.s32.totalorder 2, %s18
      // Predicated region
      $region57: #{tpu_custom_call.1} parent=5 // pred_check
        %p343 = pneg %p342
      $region58: #{tpu_custom_call.1} parent=5 // pred_check_branch
        %345 = sbr.rel (%p343) target = $region60
      $region59: #{tpu_custom_call.1} parent=5 // pred_region
        %s346 = ssub.s32 %s18, 2
        // Predicated region
        $region61: #{tpu_custom_call.1} parent=59 // pred_check
          %p347 = pneg %p162
        $region62: #{tpu_custom_call.1} parent=59 // pred_check_branch
          %349 = sbr.rel (%p347) target = $region64
        $region63: #{tpu_custom_call.1} parent=59 // pred_region
          %s350 = sand.u32 %s147, 1
          %s351 = scalar_lea.sflag [#allocation4], %s350
          %s352 = sand.u32 %s147, 1
          %s353 = smul.addr %s352, 8
          %s354 = scalar_lea.vmem [#allocation8], %s353
          %355 = dma.done %s351, 128
        $region64: #{tpu_custom_call.1} parent=59 // pred_fallthru
          _
      $region60: #{tpu_custom_call.1} parent=5 // pred_fallthru
        _
    $region6: #{tpu_custom_call.1} parent=1 // loop_footer
      %s22 = sadd.s32 1, %s18
    $region7: #{tpu_custom_call.1} parent=1 // loop_footer_branch
      %17 = sbr.rel target = $region3
    $region8: #{tpu_custom_call.1} parent=1 // loop_exit
      _
    %356 = vsyncpa [#allocation3], 1
    %s357 = scalar_lea.sflag [#allocation3], 1
    %358 = vsyncpa %s357, 1
    %359 = vsyncpa [#allocation6], 1
    %360 = vsyncpa [#allocation4], 1
    %s361 = scalar_lea.sflag [#allocation4], 1
    %362 = vsyncpa %s361, 1

</llo_original>
